<compile_context>
chip_gen: v7x
topology: tpu7x:2x2x1
jax: 0.10.0
libtpu: 0.0.40
codegen_flags: <defaults>
</compile_context>

<pallas_src>
import math

import jax
import jax.numpy as jnp
import numpy as np
from jax.experimental import pallas as pl
from jax.experimental.pallas import tpu as pltpu


def _build_embedding(num_steps: int, dim: float) -> jnp.ndarray:
    """Plain-JAX glue: identical to DiffusionEmbedding._build_embedding."""
    dim = int(dim)
    steps = jnp.arange(num_steps, dtype=jnp.float32)[:, None]                 # (T, 1)
    freqs = 10.0 ** (jnp.arange(dim, dtype=jnp.float32) / (dim - 1) * 4.0)    # (dim,)
    table = steps * freqs[None, :]                                            # (T, dim)
    return jnp.concatenate([jnp.sin(table), jnp.cos(table)], axis=1)          # (T, 2*dim)


def _diffusion_embedding_kernel(
    idx_ref,      # VMEM (B, 1) int32 — diffusion steps
    emb_ref,      # VMEM (num_steps, emb_dim) f32 — sin/cos table
    w1_ref,       # VMEM (emb_dim, proj_dim) bf16
    b1_ref,       # VMEM (1, proj_dim) f32
    w2_ref,       # VMEM (proj_dim, proj_dim) bf16
    b2_ref,       # VMEM (1, proj_dim) f32
    out_ref,      # VMEM (B, proj_dim) f32
):
    B = out_ref.shape[0]
    num_steps = emb_ref.shape[0]

    # --- gather as one-hot matmul on the MXU (exact row selection in f32) ---
    idx = idx_ref[...]                                                  # (B, 1)
    cols = jax.lax.broadcasted_iota(jnp.int32, (B, num_steps), 1)       # (B, T)
    onehot = (cols == idx).astype(jnp.float32)                          # (B, T)
    x = jnp.dot(onehot, emb_ref[...], preferred_element_type=jnp.float32)  # (B, E)

    # --- projection1 + SiLU: bf16 MXU operands, f32 accumulate / activate ---
    h = jnp.dot(x.astype(w1_ref.dtype), w1_ref[...],
                preferred_element_type=jnp.float32) + b1_ref[...]
    h = h * jax.nn.sigmoid(h)

    # --- projection2 + SiLU ---
    y = jnp.dot(h.astype(w2_ref.dtype), w2_ref[...],
                preferred_element_type=jnp.float32) + b2_ref[...]
    y = y * jax.nn.sigmoid(y)

    out_ref[...] = y.astype(out_ref.dtype)


def diffusion_embedding(diffusion_step, embedding, w1, b1, w2, b2,
                        *, weight_dtype=jnp.bfloat16):
    """Pallas DiffusionEmbedding forward.

    diffusion_step: (B,) int indices into the embedding table.
    embedding:      (num_steps, emb_dim) f32 sin/cos table.
    w1, w2:         Linear weights pre-transposed as (in_features, out_features).
    b1, b2:         (proj_dim,) or (1, proj_dim) biases.
    Returns (B, proj_dim) float32.
    """
    num_steps, emb_dim = embedding.shape
    proj_dim = w1.shape[1]
    B = diffusion_step.shape[0]

    # Pad batch to a multiple of 8 (f32 sublane count) -> full, unmasked tiles.
    B_pad = max(8, ((B + 7) // 8) * 8)
    idx = jnp.zeros((B_pad, 1), jnp.int32).at[:B, 0].set(
        diffusion_step.astype(jnp.int32))

    # bf16 weights for the MXU; biases + accumulation + SiLU stay in f32.
    w1c = w1.astype(weight_dtype)
    w2c = w2.astype(weight_dtype)
    b1c = jnp.asarray(b1, jnp.float32).reshape(1, proj_dim)
    b2c = jnp.asarray(b2, jnp.float32).reshape(1, proj_dim)

    out = pl.pallas_call(
        _diffusion_embedding_kernel,
        out_shape=jax.ShapeDtypeStruct((B_pad, proj_dim), jnp.float32),
        grid=(1,),
        in_specs=[
            pl.BlockSpec((B_pad, 1), lambda g: (0, 0)),
            pl.BlockSpec((num_steps, emb_dim), lambda g: (0, 0)),
            pl.BlockSpec((emb_dim, proj_dim), lambda g: (0, 0)),
            pl.BlockSpec((1, proj_dim), lambda g: (0, 0)),
            pl.BlockSpec((proj_dim, proj_dim), lambda g: (0, 0)),
            pl.BlockSpec((1, proj_dim), lambda g: (0, 0)),
        ],
        out_specs=pl.BlockSpec((B_pad, proj_dim), lambda g: (0, 0)),
        compiler_params=pltpu.CompilerParams(
            dimension_semantics=("arbitrary",)),
    )(idx, embedding.astype(jnp.float32), w1c, b1c, w2c, b2c)

    return out[:B]


if __name__ == "__main__":
    # Module hyper-parameters (defaults of DiffusionEmbedding).
    num_steps = 50
    embedding_dim = 128
    projection_dim = 128   # projection_dim=None -> embedding_dim
    batch = 8              # batch of diffusion steps (multiple of 8)

    key = jax.random.PRNGKey(0)
    k_idx, k_w1, k_b1, k_w2, k_b2 = jax.random.split(key, 5)

    # Deterministic synthetic parameters (PyTorch Linear default-ish init range),
    # stored pre-transposed as (in, out).
    lim1 = 1.0 / math.sqrt(embedding_dim)
    lim2 = 1.0 / math.sqrt(projection_dim)
    w1 = jax.random.uniform(k_w1, (embedding_dim, projection_dim),
                            jnp.float32, -lim1, lim1)
    b1 = jax.random.uniform(k_b1, (projection_dim,), jnp.float32, -lim1, lim1)
    w2 = jax.random.uniform(k_w2, (projection_dim, projection_dim),
                            jnp.float32, -lim2, lim2)
    b2 = jax.random.uniform(k_b2, (projection_dim,), jnp.float32, -lim2, lim2)

    embedding = _build_embedding(num_steps, embedding_dim / 2)   # (50, 128)
    diffusion_step = jax.random.randint(k_idx, (batch,), 0, num_steps, jnp.int32)

    out = diffusion_embedding(diffusion_step, embedding, w1, b1, w2, b2)
    out = jax.block_until_ready(out)

    # Plain-JAX reference with the same mixed-precision policy as the kernel
    # (bf16 operands into the matmuls, f32 accumulation, f32 bias/SiLU).
    w1q = w1.astype(jnp.bfloat16).astype(jnp.float32)
    w2q = w2.astype(jnp.bfloat16).astype(jnp.float32)
    x_r = embedding[diffusion_step]
    h_r = x_r.astype(jnp.bfloat16).astype(jnp.float32) @ w1q + b1
    h_r = h_r * jax.nn.sigmoid(h_r)
    y_r = h_r.astype(jnp.bfloat16).astype(jnp.float32) @ w2q + b2
    y_r = y_r * jax.nn.sigmoid(y_r)

    np.testing.assert_allclose(np.asarray(out), np.asarray(y_r),
                               rtol=2e-3, atol=2e-3)
    print("KERNEL_OK")
</pallas_src>

<mosaic_0001>
module attributes {stable_mosaic.version = 11 : i64} {
  func.func @_diffusion_embedding_kernel(%arg0: i32, %arg1: memref<8x1xi32, #tpu.memory_space<vmem>>, %arg2: memref<50x128xf32, #tpu.memory_space<vmem>>, %arg3: memref<128x128xbf16, #tpu.memory_space<vmem>>, %arg4: memref<1x128xf32, #tpu.memory_space<vmem>>, %arg5: memref<128x128xbf16, #tpu.memory_space<vmem>>, %arg6: memref<1x128xf32, #tpu.memory_space<vmem>>, %arg7: memref<8x128xf32, #tpu.memory_space<vmem>>) attributes {dimension_semantics = [#tpu.dimension_semantics<arbitrary>], iteration_bounds = array<i64: 1>, scalar_prefetch = 0 : i64, scratch_operands = 0 : i64, tpu.core_type = #tpu.core_type<tc>, window_params = [{pipeline_mode = #tpu.pipeline_mode<synchronous>, transform_indices = @transform_0, window_bounds = array<i64: 8, 1>}, {pipeline_mode = #tpu.pipeline_mode<synchronous>, transform_indices = @transform_1, window_bounds = array<i64: 50, 128>}, {pipeline_mode = #tpu.pipeline_mode<synchronous>, transform_indices = @transform_2, window_bounds = array<i64: 128, 128>}, {pipeline_mode = #tpu.pipeline_mode<synchronous>, transform_indices = @transform_3, window_bounds = array<i64: 1, 128>}, {pipeline_mode = #tpu.pipeline_mode<synchronous>, transform_indices = @transform_4, window_bounds = array<i64: 128, 128>}, {pipeline_mode = #tpu.pipeline_mode<synchronous>, transform_indices = @transform_5, window_bounds = array<i64: 1, 128>}, {pipeline_mode = #tpu.pipeline_mode<synchronous>, transform_indices = @transform_6, window_bounds = array<i64: 8, 128>}]} {
    %c0 = arith.constant 0 : index
    %c0_0 = arith.constant 0 : index
    %0 = vector.load %arg1[%c0, %c0_0] : memref<8x1xi32, #tpu.memory_space<vmem>>, vector<8x1xi32>
    %1 = tpu.iota {dimensions = array<i32: 1>} : vector<8x50xi32>
    %2 = vector.broadcast %0 : vector<8x1xi32> to vector<8x50xi32>
    %3 = arith.cmpi eq, %1, %2 : vector<8x50xi32>
    %4 = arith.extui %3 : vector<8x50xi1> to vector<8x50xi32>
    %5 = arith.sitofp %4 : vector<8x50xi32> to vector<8x50xf32>
    %c0_1 = arith.constant 0 : index
    %c0_2 = arith.constant 0 : index
    %6 = vector.load %arg2[%c0_1, %c0_2] : memref<50x128xf32, #tpu.memory_space<vmem>>, vector<50x128xf32>
    %cst = arith.constant dense<0.000000e+00> : vector<8x128xf32>
    %7 = tpu.matmul %5, %6, %cst {dimension_numbers = #tpu.dot_dimension_numbers<[1], [0], [0], [1], [0, 0, 1, 1], [], []>} : vector<8x50xf32>, vector<50x128xf32>, vector<8x128xf32> -> vector<8x128xf32>
    %8 = arith.truncf %7 : vector<8x128xf32> to vector<8x128xbf16>
    %c0_3 = arith.constant 0 : index
    %c0_4 = arith.constant 0 : index
    %9 = vector.load %arg3[%c0_3, %c0_4] : memref<128x128xbf16, #tpu.memory_space<vmem>>, vector<128x128xbf16>
    %cst_5 = arith.constant dense<0.000000e+00> : vector<8x128xf32>
    %10 = tpu.matmul %8, %9, %cst_5 {dimension_numbers = #tpu.dot_dimension_numbers<[1], [0], [0], [1], [0, 0, 1, 1], [], []>} : vector<8x128xbf16>, vector<128x128xbf16>, vector<8x128xf32> -> vector<8x128xf32>
    %c0_6 = arith.constant 0 : index
    %c0_7 = arith.constant 0 : index
    %11 = vector.load %arg4[%c0_6, %c0_7] : memref<1x128xf32, #tpu.memory_space<vmem>>, vector<1x128xf32>
    %12 = vector.broadcast %11 : vector<1x128xf32> to vector<8x128xf32>
    %13 = arith.addf %10, %12 : vector<8x128xf32>
    %14 = arith.negf %13 : vector<8x128xf32>
    %15 = math.exp %14 : vector<8x128xf32>
    %cst_8 = arith.constant 1.000000e+00 : f32
    %16 = vector.broadcast %cst_8 : f32 to vector<8x128xf32>
    %17 = arith.addf %16, %15 : vector<8x128xf32>
    %18 = arith.divf %16, %17 : vector<8x128xf32>
    %19 = arith.mulf %13, %18 : vector<8x128xf32>
    %20 = arith.truncf %19 : vector<8x128xf32> to vector<8x128xbf16>
    %c0_9 = arith.constant 0 : index
    %c0_10 = arith.constant 0 : index
    %21 = vector.load %arg5[%c0_9, %c0_10] : memref<128x128xbf16, #tpu.memory_space<vmem>>, vector<128x128xbf16>
    %cst_11 = arith.constant dense<0.000000e+00> : vector<8x128xf32>
    %22 = tpu.matmul %20, %21, %cst_11 {dimension_numbers = #tpu.dot_dimension_numbers<[1], [0], [0], [1], [0, 0, 1, 1], [], []>} : vector<8x128xbf16>, vector<128x128xbf16>, vector<8x128xf32> -> vector<8x128xf32>
    %c0_12 = arith.constant 0 : index
    %c0_13 = arith.constant 0 : index
    %23 = vector.load %arg6[%c0_12, %c0_13] : memref<1x128xf32, #tpu.memory_space<vmem>>, vector<1x128xf32>
    %24 = vector.broadcast %23 : vector<1x128xf32> to vector<8x128xf32>
    %25 = arith.addf %22, %24 : vector<8x128xf32>
    %26 = arith.negf %25 : vector<8x128xf32>
    %27 = math.exp %26 : vector<8x128xf32>
    %cst_14 = arith.constant 1.000000e+00 : f32
    %28 = vector.broadcast %cst_14 : f32 to vector<8x128xf32>
    %29 = arith.addf %28, %27 : vector<8x128xf32>
    %30 = arith.divf %28, %29 : vector<8x128xf32>
    %31 = arith.mulf %25, %30 : vector<8x128xf32>
    %c0_15 = arith.constant 0 : index
    %c0_16 = arith.constant 0 : index
    %32 = vector.load %arg7[%c0_15, %c0_16] : memref<8x128xf32, #tpu.memory_space<vmem>>, vector<8x128xf32>
    tpu.vector_store %arg7[%c0_15, %c0_16], %31 {strides = array<i32>} : memref<8x128xf32, #tpu.memory_space<vmem>>, vector<8x128xf32>,
    return
  }
  func.func @transform_0(%arg0: i32) -> (i32, i32) {
    %c0_i32 = arith.constant 0 : i32
    %c0_i32_0 = arith.constant 0 : i32
    %c0_i32_1 = arith.constant 0 : i32
    return %c0_i32, %c0_i32_0 : i32, i32
  }
  func.func @transform_1(%arg0: i32) -> (i32, i32) {
    %c0_i32 = arith.constant 0 : i32
    %c0_i32_0 = arith.constant 0 : i32
    %c0_i32_1 = arith.constant 0 : i32
    return %c0_i32, %c0_i32_0 : i32, i32
  }
  func.func @transform_2(%arg0: i32) -> (i32, i32) {
    %c0_i32 = arith.constant 0 : i32
    %c0_i32_0 = arith.constant 0 : i32
    %c0_i32_1 = arith.constant 0 : i32
    return %c0_i32, %c0_i32_0 : i32, i32
  }
  func.func @transform_3(%arg0: i32) -> (i32, i32) {
    %c0_i32 = arith.constant 0 : i32
    %c0_i32_0 = arith.constant 0 : i32
    %c0_i32_1 = arith.constant 0 : i32
    return %c0_i32, %c0_i32_0 : i32, i32
  }
  func.func @transform_4(%arg0: i32) -> (i32, i32) {
    %c0_i32 = arith.constant 0 : i32
    %c0_i32_0 = arith.constant 0 : i32
    %c0_i32_1 = arith.constant 0 : i32
    return %c0_i32, %c0_i32_0 : i32, i32
  }
  func.func @transform_5(%arg0: i32) -> (i32, i32) {
    %c0_i32 = arith.constant 0 : i32
    %c0_i32_0 = arith.constant 0 : i32
    %c0_i32_1 = arith.constant 0 : i32
    return %c0_i32, %c0_i32_0 : i32, i32
  }
  func.func @transform_6(%arg0: i32) -> (i32, i32) {
    %c0_i32 = arith.constant 0 : i32
    %c0_i32_0 = arith.constant 0 : i32
    %c0_i32_1 = arith.constant 0 : i32
    return %c0_i32, %c0_i32_0 : i32, i32
  }
}

</mosaic_0001>

<llo_original>
// kernel: tpu_custom_call.1
$region0: #{tpu_custom_call.1}
  #allocation0 [shape = 'u32[]', space=smem, size = 0x4, offset = 0x4, fixed_abs, tag = 'smem constant byte address 0x4 - core index']
  #allocation1 [shape = 'u32[144,128]{1,0:T(1,128)}', space=vmem, size = 0x12000, scoped, tag = 'internal scratch']
  %s0 = inlined_call_operand.vmem [shape: s32[8,1], index: 0, kind: input, shape index: {}]
  %s1 = inlined_call_operand.hbm [shape: f32[50,128], index: 1, kind: input, shape index: {}]
  %s2 = inlined_call_operand.hbm [shape: bf16[128,128], index: 2, kind: input, shape index: {}]
  %s3 = inlined_call_operand.vmem [shape: f32[1,128], index: 3, kind: input, shape index: {}]
  %s4 = inlined_call_operand.hbm [shape: bf16[128,128], index: 4, kind: input, shape index: {}]
  %s5 = inlined_call_operand.vmem [shape: f32[1,128], index: 5, kind: input, shape index: {}]
  %s6 = inlined_call_operand.hbm [shape: f32[8,128], index: 6, kind: output, shape index: {}]
  %s7 = sld [smem:[#allocation0]]
  $region46: #{tpu_custom_call.1} parent=0
    _
  %s9 = ssub.s32 1, %s7
  %s10 = scalar_select 0, %s9, %s7
  $region1: #{tpu_custom_call.1} parent=0
    #allocation2 [shape = 'u8[28672]{0}', space=vmem, size = 0x7000, scoped, tag = 'input window, operand 1, single buffered']
    #allocation3 [shape = 's32[1]{0}', space=sflag, size = 0x4, scoped, tag = 'scoped memory for tpu_custom_call.1']
    #allocation4 [shape = 's32[1]{0}', space=sflag, size = 0x4, scoped, tag = 'scoped memory for tpu_custom_call.1']
    #allocation5 [shape = 'u8[32768]{0}', space=vmem, size = 0x8000, scoped, tag = 'input window, operand 2, single buffered']
    #allocation6 [shape = 's32[1]{0}', space=sflag, size = 0x4, scoped, tag = 'scoped memory for tpu_custom_call.1']
    #allocation7 [shape = 'u8[32768]{0}', space=vmem, size = 0x8000, scoped, tag = 'input window, operand 4, single buffered']
    #allocation8 [shape = 'u8[4096]{0}', space=vmem, size = 0x1000, scoped, tag = 'output window, operand 0, single buffered']
    %11 = vsyncpa [#allocation3], 0
    %12 = vsyncpa [#allocation6], 0
    %13 = vsyncpa [#allocation4], 0
    // Predicated region
    $region2: #{tpu_custom_call.1} parent=1 // pred_check
      _
    $region3: #{tpu_custom_call.1} parent=1 // pred_check_branch
      %15 = sbr.rel (0) target = $region5
    $region4: #{tpu_custom_call.1} parent=1 // pred_region
      _
    $region5: #{tpu_custom_call.1} parent=1 // pred_fallthru
      _
    // Predicated region
    $region6: #{tpu_custom_call.1} parent=1 // pred_check
      _
    $region7: #{tpu_custom_call.1} parent=1 // pred_check_branch
      %17 = sbr.rel (0) target = $region9
    $region8: #{tpu_custom_call.1} parent=1 // pred_region
      %s19 = ssub.s32 896, 896
      %20 = vsyncadd [#allocation3], %s19
      %s21 = sshll.u32 [#allocation2], 4
      %s22 = int_to_ptr.vmem [resolvable:$true] %s21
      %27 = dma.hbm_to_vmem [thread:$0]  %s1, 896, %s22, [#allocation3], 128, 128, 8
    $region9: #{tpu_custom_call.1} parent=1 // pred_fallthru
      _
    // Predicated region
    $region10: #{tpu_custom_call.1} parent=1 // pred_check
      _
    $region11: #{tpu_custom_call.1} parent=1 // pred_check_branch
      %29 = sbr.rel (0) target = $region13
    $region12: #{tpu_custom_call.1} parent=1 // pred_region
      %s31 = ssub.s32 1024, 1024
      %32 = vsyncadd [#allocation6], %s31
      %s33 = sshll.u32 [#allocation5], 4
      %s34 = int_to_ptr.vmem [resolvable:$true] %s33
      %39 = dma.hbm_to_vmem [thread:$0]  %s2, 1024, %s34, [#allocation6], 64, 64, 4
    $region13: #{tpu_custom_call.1} parent=1 // pred_fallthru
      _
    // Predicated region
    $region14: #{tpu_custom_call.1} parent=1 // pred_check
      _
    $region15: #{tpu_custom_call.1} parent=1 // pred_check_branch
      %41 = sbr.rel (0) target = $region17
    $region16: #{tpu_custom_call.1} parent=1 // pred_region
      _
    $region17: #{tpu_custom_call.1} parent=1 // pred_fallthru
      _
    // Predicated region
    $region18: #{tpu_custom_call.1} parent=1 // pred_check
      _
    $region19: #{tpu_custom_call.1} parent=1 // pred_check_branch
      %43 = sbr.rel (0) target = $region21
    $region20: #{tpu_custom_call.1} parent=1 // pred_region
      %s45 = ssub.s32 1024, 1024
      %46 = vsyncadd [#allocation6], %s45
      %s47 = sshll.u32 [#allocation7], 4
      %s48 = int_to_ptr.vmem [resolvable:$true] %s47
      %53 = dma.hbm_to_vmem [thread:$0]  %s4, 1024, %s48, [#allocation6], 64, 64, 4
    $region21: #{tpu_custom_call.1} parent=1 // pred_fallthru
      _
    // Predicated region
    $region22: #{tpu_custom_call.1} parent=1 // pred_check
      _
    $region23: #{tpu_custom_call.1} parent=1 // pred_check_branch
      %55 = sbr.rel (0) target = $region25
    $region24: #{tpu_custom_call.1} parent=1 // pred_region
      _
    $region25: #{tpu_custom_call.1} parent=1 // pred_fallthru
      _
    // Predicated region
    $region26: #{tpu_custom_call.1} parent=1 // pred_check
      _
    $region27: #{tpu_custom_call.1} parent=1 // pred_check_branch
      %57 = sbr.rel (0) target = $region29
    $region28: #{tpu_custom_call.1} parent=1 // pred_region
      %58 = dma.done [#allocation3], 896
    $region29: #{tpu_custom_call.1} parent=1 // pred_fallthru
      _
    // Predicated region
    $region30: #{tpu_custom_call.1} parent=1 // pred_check
      _
    $region31: #{tpu_custom_call.1} parent=1 // pred_check_branch
      %60 = sbr.rel (0) target = $region33
    $region32: #{tpu_custom_call.1} parent=1 // pred_region
      %61 = dma.done [#allocation6], 1024
    $region33: #{tpu_custom_call.1} parent=1 // pred_fallthru
      _
    // Predicated region
    $region34: #{tpu_custom_call.1} parent=1 // pred_check
      _
    $region35: #{tpu_custom_call.1} parent=1 // pred_check_branch
      %63 = sbr.rel (0) target = $region37
    $region36: #{tpu_custom_call.1} parent=1 // pred_region
      %64 = dma.done [#allocation6], 1024
    $region37: #{tpu_custom_call.1} parent=1 // pred_fallthru
      _
    %v66 = vld [vmem:[%s0] sm:$0xff]
    %v67 = vlaneseq
    %v68 = vand.u32 %v67, 127
    %69 = vset.pattern.permute.xlu0 0
    %70 = vperm.xlu0 %69, %v66
    %v71 = vpop.permute.xlu0 %70
    %vm72 = vcmp.eq.s32.totalorder %v68, %v71
    %v73 = vsel %vm72, 1, 0
    %v74 = vcvt.s32.f32 %v73
    %v75 = vld [vmem:[#allocation2] sm:$0xff]
    %v76 = vld [vmem:[#allocation2 + $0x8] sm:$0xff]
    %v77 = vld [vmem:[#allocation2 + $0x10] sm:$0xff]
    %v78 = vld [vmem:[#allocation2 + $0x18] sm:$0xff]
    %v79 = vld [vmem:[#allocation2 + $0x20] sm:$0xff]
    %v80 = vld [vmem:[#allocation2 + $0x28] sm:$0xff]
    %v81 = vld [vmem:[#allocation2 + $0x30] sm:$0x3]
    %vm82 = vcmask 408576
    %v84 = vsel %vm82, %v74, 0
    %vm86 = vcmask 1041408
    %v88 = vsel %vm86, %v81, 0
    %90 = vmatprep.subr.mxu0 0.0
    %91 = vmatpush1.msra.mxu0 %v75
    %92 = vmatprep.subr.mxu0 0.0
    %93 = vmatpush1.msra.mxu0 %v76
    %94 = vmatprep.subr.mxu0 0.0
    %95 = vmatpush1.msra.mxu0 %v77
    %96 = vmatprep.subr.mxu0 0.0
    %97 = vmatpush1.msra.mxu0 %v78
    %98 = vmatprep.subr.mxu0 0.0
    %99 = vmatpush1.msra.mxu0 %v79
    %100 = vmatprep.subr.mxu0 0.0
    %101 = vmatpush1.msra.mxu0 %v80
    %102 = vmatprep.subr.mxu0 0.0
    %103 = vmatpush1.msra.mxu0 %v88
    %104 = vmatprep.subr.mxu0 0.0
    %105 = vmatpush1.msra.mxu0 0.0
    %106 = vmatprep.subr.mxu0 0.0
    %107 = vmatpush1.msra.mxu0 0.0
    %108 = vmatprep.subr.mxu0 0.0
    %109 = vmatpush1.msra.mxu0 0.0
    %110 = vmatprep.subr.mxu0 0.0
    %111 = vmatpush1.msra.mxu0 0.0
    %112 = vmatprep.subr.mxu0 0.0
    %113 = vmatpush1.msra.mxu0 0.0
    %114 = vmatprep.subr.mxu0 0.0
    %115 = vmatpush1.msra.mxu0 0.0
    %116 = vmatprep.subr.mxu0 0.0
    %117 = vmatpush1.msra.mxu0 0.0
    %118 = vmatprep.subr.mxu0 0.0
    %119 = vmatpush1.msra.mxu0 0.0
    %120 = vmatprep.subr.mxu0 0.0
    %121 = vmatpush1.msra.mxu0 0.0
    %122 = vmatprep.subr.mxu0 0.0
    %123 = vmatpush1.msra.mxu0 0.0
    %124 = vmatprep.subr.mxu0 0.0
    %125 = vmatpush1.msra.mxu0 0.0
    %126 = vmatprep.subr.mxu0 0.0
    %127 = vmatpush1.msra.mxu0 0.0
    %128 = vmatprep.subr.mxu0 0.0
    %129 = vmatpush1.msra.mxu0 0.0
    %130 = vmatprep.subr.mxu0 0.0
    %131 = vmatpush1.msra.mxu0 0.0
    %132 = vmatprep.subr.mxu0 0.0
    %133 = vmatpush1.msra.mxu0 0.0
    %134 = vmatprep.subr.mxu0 0.0
    %135 = vmatpush1.msra.mxu0 0.0
    %136 = vmatprep.subr.mxu0 0.0
    %137 = vmatpush1.msra.mxu0 0.0
    %138 = vmatprep.subr.mxu0 0.0
    %139 = vmatpush1.msra.mxu0 0.0
    %140 = vmatprep.subr.mxu0 0.0
    %141 = vmatpush1.msra.mxu0 0.0
    %142 = vmatprep.subr.mxu0 0.0
    %143 = vmatpush1.msra.mxu0 0.0
    %144 = vmatprep.subr.mxu0 0.0
    %145 = vmatpush1.msra.mxu0 0.0
    %146 = vmatprep.subr.mxu0 0.0
    %147 = vmatpush1.msra.mxu0 0.0
    %148 = vmatprep.subr.mxu0 0.0
    %149 = vmatpush1.msra.mxu0 0.0
    %150 = vmatprep.subr.mxu0 0.0
    %151 = vmatpush1.msra.mxu0 0.0
    %152 = vmatprep.subr.mxu0 0.0
    %153 = vmatpush1.msra.mxu0 0.0
    %154 = vmatprep.mubr.f32.mxu0 0.0
    %155 = vmatmul.mubr.f32.gmra.mrb[0].mxu0 %v84
    %v156 = vpop.f32.mrb[0].mxu0
    %v157 = vadd.f32 0.0, %v156
    %v158 = vpop.f32.mrb[0].mxu0
    %159 = vdwg.mxu0
    %v160 = vpack.c.bf16 %v157, %v157
    %v161 = vld [vmem:[#allocation5] sm:$0xf]
    %v162 = vld [vmem:[#allocation5 + $0x4] sm:$0xf]
    %v163 = vld [vmem:[#allocation5 + $0x8] sm:$0xf]
    %v164 = vld [vmem:[#allocation5 + $0xc] sm:$0xf]
    %v165 = vld [vmem:[#allocation5 + $0x10] sm:$0xf]
    %v166 = vld [vmem:[#allocation5 + $0x14] sm:$0xf]
    %v167 = vld [vmem:[#allocation5 + $0x18] sm:$0xf]
    %v168 = vld [vmem:[#allocation5 + $0x1c] sm:$0xf]
    %v169 = vld [vmem:[#allocation5 + $0x20] sm:$0xf]
    %v170 = vld [vmem:[#allocation5 + $0x24] sm:$0xf]
    %v171 = vld [vmem:[#allocation5 + $0x28] sm:$0xf]
    %v172 = vld [vmem:[#allocation5 + $0x2c] sm:$0xf]
    %v173 = vld [vmem:[#allocation5 + $0x30] sm:$0xf]
    %v174 = vld [vmem:[#allocation5 + $0x34] sm:$0xf]
    %v175 = vld [vmem:[#allocation5 + $0x38] sm:$0xf]
    %v176 = vld [vmem:[#allocation5 + $0x3c] sm:$0xf]
    %v177 = vld [vmem:[%s3] sm:$0x1]
    %v179 = vlaneseq
    %v180 = vshrl.u32 %v179, 7
    %v181 = vsub.s32 0, %v180
    %v182 = vrot.slane %v177, %v181
    %v200 = vunpack.c.l.b16 %v161
    %v201 = vunpack.c.l.b16 %v162
    %v202 = vunpack.c.l.b16 %v163
    %v203 = vunpack.c.l.b16 %v164
    %v204 = vunpack.c.l.b16 %v165
    %v205 = vunpack.c.l.b16 %v166
    %v206 = vunpack.c.l.b16 %v167
    %v207 = vunpack.c.l.b16 %v168
    %v208 = vunpack.c.l.b16 %v169
    %v209 = vunpack.c.l.b16 %v170
    %v210 = vunpack.c.l.b16 %v171
    %v211 = vunpack.c.l.b16 %v172
    %v212 = vunpack.c.l.b16 %v173
    %v213 = vunpack.c.l.b16 %v174
    %v214 = vunpack.c.l.b16 %v175
    %v215 = vunpack.c.l.b16 %v176
    %v216 = vpack.c.b16 %v201, %v200
    %v217 = vpack.c.b16 %v203, %v202
    %v218 = vpack.c.b16 %v205, %v204
    %v219 = vpack.c.b16 %v207, %v206
    %v220 = vpack.c.b16 %v209, %v208
    %v221 = vpack.c.b16 %v211, %v210
    %v222 = vpack.c.b16 %v213, %v212
    %v223 = vpack.c.b16 %v215, %v214
    %232 = vmatprep.subr.bf16.mxu0 0
    %233 = vmatpush1.bf16.msra.mxu0 %v216
    %234 = vmatprep.subr.bf16.mxu0 0
    %235 = vmatpush1.bf16.msra.mxu0 %v217
    %236 = vmatprep.subr.bf16.mxu0 0
    %237 = vmatpush1.bf16.msra.mxu0 %v218
    %238 = vmatprep.subr.bf16.mxu0 0
    %239 = vmatpush1.bf16.msra.mxu0 %v219
    %240 = vmatprep.subr.bf16.mxu0 0
    %241 = vmatpush1.bf16.msra.mxu0 %v220
    %242 = vmatprep.subr.bf16.mxu0 0
    %243 = vmatpush1.bf16.msra.mxu0 %v221
    %244 = vmatprep.subr.bf16.mxu0 0
    %245 = vmatpush1.bf16.msra.mxu0 %v222
    %246 = vmatprep.subr.bf16.mxu0 0
    %247 = vmatpush1.bf16.msra.mxu0 %v223
    %248 = vmatprep.subr.bf16.mxu0 0
    %249 = vmatpush1.bf16.msra.mxu0 0
    %250 = vmatprep.subr.bf16.mxu0 0
    %251 = vmatpush1.bf16.msra.mxu0 0
    %252 = vmatprep.subr.bf16.mxu0 0
    %253 = vmatpush1.bf16.msra.mxu0 0
    %254 = vmatprep.subr.bf16.mxu0 0
    %255 = vmatpush1.bf16.msra.mxu0 0
    %256 = vmatprep.subr.bf16.mxu0 0
    %257 = vmatpush1.bf16.msra.mxu0 0
    %258 = vmatprep.subr.bf16.mxu0 0
    %259 = vmatpush1.bf16.msra.mxu0 0
    %260 = vmatprep.subr.bf16.mxu0 0
    %261 = vmatpush1.bf16.msra.mxu0 0
    %262 = vmatprep.subr.bf16.mxu0 0
    %263 = vmatpush1.bf16.msra.mxu0 0
    %264 = vmatprep.mubr.bf16.mxu0 0
    %265 = vmatmul.mubr.bf16.gmra.mrb[0].mxu0 %v160
    %v266 = vpop.f32.mrb[0].mxu0
    %v267 = vadd.f32 %v182, %v266
    %v268 = vpop.f32.mrb[0].mxu0
    %v269 = vpop.f32.mrb[0].mxu0
    %v270 = vpop.f32.mrb[0].mxu0
    %271 = vdwg.mxu0
    %v272 = vxor.u32 %v267, 2147483648
    %v273 = vmul.f32 %v272, 1.442695
    %v274 = vpow.pop %v273
    %v275 = vadd.f32 %v274, 1.0
    %v276 = vrcp.pop %v275
    %v277 = vmul.f32 1.0, %v276
    %v278 = vmul.f32 %v267, %v277
    %v279 = vpack.c.bf16 %v278, %v278
    %v280 = vld [vmem:[#allocation7] sm:$0xf]
    %v281 = vld [vmem:[#allocation7 + $0x4] sm:$0xf]
    %v282 = vld [vmem:[#allocation7 + $0x8] sm:$0xf]
    %v283 = vld [vmem:[#allocation7 + $0xc] sm:$0xf]
    %v284 = vld [vmem:[#allocation7 + $0x10] sm:$0xf]
    %v285 = vld [vmem:[#allocation7 + $0x14] sm:$0xf]
    %v286 = vld [vmem:[#allocation7 + $0x18] sm:$0xf]
    %v287 = vld [vmem:[#allocation7 + $0x1c] sm:$0xf]
    %v288 = vld [vmem:[#allocation7 + $0x20] sm:$0xf]
    %v289 = vld [vmem:[#allocation7 + $0x24] sm:$0xf]
    %v290 = vld [vmem:[#allocation7 + $0x28] sm:$0xf]
    %v291 = vld [vmem:[#allocation7 + $0x2c] sm:$0xf]
    %v292 = vld [vmem:[#allocation7 + $0x30] sm:$0xf]
    %v293 = vld [vmem:[#allocation7 + $0x34] sm:$0xf]
    %v294 = vld [vmem:[#allocation7 + $0x38] sm:$0xf]
    %v295 = vld [vmem:[#allocation7 + $0x3c] sm:$0xf]
    %v296 = vld [vmem:[%s5] sm:$0x1]
    %v298 = vlaneseq
    %v299 = vshrl.u32 %v298, 7
    %v300 = vsub.s32 0, %v299
    %v301 = vrot.slane %v296, %v300
    %v319 = vunpack.c.l.b16 %v280
    %v320 = vunpack.c.l.b16 %v281
    %v321 = vunpack.c.l.b16 %v282
    %v322 = vunpack.c.l.b16 %v283
    %v323 = vunpack.c.l.b16 %v284
    %v324 = vunpack.c.l.b16 %v285
    %v325 = vunpack.c.l.b16 %v286
    %v326 = vunpack.c.l.b16 %v287
    %v327 = vunpack.c.l.b16 %v288
    %v328 = vunpack.c.l.b16 %v289
    %v329 = vunpack.c.l.b16 %v290
    %v330 = vunpack.c.l.b16 %v291
    %v331 = vunpack.c.l.b16 %v292
    %v332 = vunpack.c.l.b16 %v293
    %v333 = vunpack.c.l.b16 %v294
    %v334 = vunpack.c.l.b16 %v295
    %v335 = vpack.c.b16 %v320, %v319
    %v336 = vpack.c.b16 %v322, %v321
    %v337 = vpack.c.b16 %v324, %v323
    %v338 = vpack.c.b16 %v326, %v325
    %v339 = vpack.c.b16 %v328, %v327
    %v340 = vpack.c.b16 %v330, %v329
    %v341 = vpack.c.b16 %v332, %v331
    %v342 = vpack.c.b16 %v334, %v333
    %351 = vmatprep.subr.bf16.mxu0 0
    %352 = vmatpush1.bf16.msra.mxu0 %v335
    %353 = vmatprep.subr.bf16.mxu0 0
    %354 = vmatpush1.bf16.msra.mxu0 %v336
    %355 = vmatprep.subr.bf16.mxu0 0
    %356 = vmatpush1.bf16.msra.mxu0 %v337
    %357 = vmatprep.subr.bf16.mxu0 0
    %358 = vmatpush1.bf16.msra.mxu0 %v338
    %359 = vmatprep.subr.bf16.mxu0 0
    %360 = vmatpush1.bf16.msra.mxu0 %v339
    %361 = vmatprep.subr.bf16.mxu0 0
    %362 = vmatpush1.bf16.msra.mxu0 %v340
    %363 = vmatprep.subr.bf16.mxu0 0
    %364 = vmatpush1.bf16.msra.mxu0 %v341
    %365 = vmatprep.subr.bf16.mxu0 0
    %366 = vmatpush1.bf16.msra.mxu0 %v342
    %367 = vmatprep.subr.bf16.mxu0 0
    %368 = vmatpush1.bf16.msra.mxu0 0
    %369 = vmatprep.subr.bf16.mxu0 0
    %370 = vmatpush1.bf16.msra.mxu0 0
    %371 = vmatprep.subr.bf16.mxu0 0
    %372 = vmatpush1.bf16.msra.mxu0 0
    %373 = vmatprep.subr.bf16.mxu0 0
    %374 = vmatpush1.bf16.msra.mxu0 0
    %375 = vmatprep.subr.bf16.mxu0 0
    %376 = vmatpush1.bf16.msra.mxu0 0
    %377 = vmatprep.subr.bf16.mxu0 0
    %378 = vmatpush1.bf16.msra.mxu0 0
    %379 = vmatprep.subr.bf16.mxu0 0
    %380 = vmatpush1.bf16.msra.mxu0 0
    %381 = vmatprep.subr.bf16.mxu0 0
    %382 = vmatpush1.bf16.msra.mxu0 0
    %383 = vmatprep.mubr.bf16.mxu0 0
    %384 = vmatmul.mubr.bf16.gmra.mrb[0].mxu0 %v279
    %v385 = vpop.f32.mrb[0].mxu0
    %v386 = vadd.f32 %v301, %v385
    %v387 = vpop.f32.mrb[0].mxu0
    %v388 = vpop.f32.mrb[0].mxu0
    %v389 = vpop.f32.mrb[0].mxu0
    %390 = vdwg.mxu0
    %v391 = vxor.u32 %v386, 2147483648
    %v392 = vmul.f32 %v391, 1.442695
    %v393 = vpow.pop %v392
    %v394 = vadd.f32 %v393, 1.0
    %v395 = vrcp.pop %v394
    %v396 = vmul.f32 1.0, %v395
    %v397 = vmul.f32 %v386, %v396
    %398 = vst [vmem:[#allocation8] sm:$0xff] %v397
    // Predicated region
    $region38: #{tpu_custom_call.1} parent=1 // pred_check
      _
    $region39: #{tpu_custom_call.1} parent=1 // pred_check_branch
      %400 = sbr.rel (0) target = $region41
    $region40: #{tpu_custom_call.1} parent=1 // pred_region
      %s402 = ssub.s32 128, 128
      %403 = vsyncadd [#allocation4], %s402
      %s405 = sshll.u32 [#allocation8], 4
      %s406 = int_to_ptr.vmem [resolvable:$true] %s405
      %408 = dma.vmem_to_hbm [thread:$0]  %s406, 128, %s6, [#allocation4]
    $region41: #{tpu_custom_call.1} parent=1 // pred_fallthru
      _
    // Predicated region
    $region42: #{tpu_custom_call.1} parent=1 // pred_check
      _
    $region43: #{tpu_custom_call.1} parent=1 // pred_check_branch
      %410 = sbr.rel (0) target = $region45
    $region44: #{tpu_custom_call.1} parent=1 // pred_region
      %411 = dma.done [#allocation4], 128
    $region45: #{tpu_custom_call.1} parent=1 // pred_fallthru
      _
    %412 = vsyncpa [#allocation3], 1
    %413 = vsyncpa [#allocation6], 1
    %414 = vsyncpa [#allocation4], 1

</llo_original>
